<compile_context>
chip_gen: v7x
topology: tpu7x:2x2x1
jax: 0.10.0
libtpu: 0.0.40
codegen_flags: <defaults>
</compile_context>

<pallas_src>
import jax
import jax.numpy as jnp
from jax.experimental import pallas as pl
from jax.experimental.pallas import tpu as pltpu


# ---------------------------------------------------------------------------
# Kernel
# ---------------------------------------------------------------------------
def fm_kernel(x_ref, o_ref):
    # x_ref: (tb, F, D), o_ref: (tb, D)
    x = x_ref[...].astype(jnp.float32)
    s = jnp.sum(x, axis=1)          # sum over fields      -> (tb, D)
    ss = jnp.sum(x * x, axis=1)     # sum of squares       -> (tb, D)
    o_ref[...] = (0.5 * (s * s - ss)).astype(o_ref.dtype)


# ---------------------------------------------------------------------------
# Pallas wrapper (batch-row tiled, single fused kernel)
# ---------------------------------------------------------------------------
def factorization_machine(x, *, tb=1024):
    B, F, D = x.shape
    # Pick the row tile: as large as possible (amortize grid-step overhead),
    # clamped to B; when tiling, keep it a multiple of 8 (sublane rule for the
    # second-to-last dim of the (tb, D) output block).
    if B <= tb:
        tb = B
    else:
        tb = max(8, (tb // 8) * 8)
    grid = (pl.cdiv(B, tb),)
    return pl.pallas_call(
        fm_kernel,
        out_shape=jax.ShapeDtypeStruct((B, D), x.dtype),
        grid=grid,
        in_specs=[pl.BlockSpec((tb, F, D), lambda i: (i, 0, 0))],
        out_specs=pl.BlockSpec((tb, D), lambda i: (i, 0)),
        compiler_params=pltpu.CompilerParams(
            dimension_semantics=("parallel",),
        ),
    )(x)


# ---------------------------------------------------------------------------
# Pure-JAX reference (mirrors the PyTorch forward exactly)
# ---------------------------------------------------------------------------
def factorization_machine_reference(x):
    square_of_sum = jnp.sum(x, axis=1) ** 2
    sum_of_square = jnp.sum(x ** 2, axis=1)
    return 0.5 * (square_of_sum - sum_of_square)


if __name__ == "__main__":
    key = jax.random.PRNGKey(0)
    k1, k2 = jax.random.split(key)

    # Small shapes consistent with the module: (batch, num_fields, embed_dim).
    batch_size, num_fields, embed_dim = 2, 8, 16
    x_small = jax.random.normal(k1, (batch_size, num_fields, embed_dim), jnp.float32)

    out_small = jax.block_until_ready(factorization_machine(x_small))
    ref_small = factorization_machine_reference(x_small)
    assert out_small.shape == (batch_size, embed_dim), out_small.shape
    assert jnp.allclose(out_small, ref_small, atol=1e-5, rtol=1e-5), "mismatch (small)"

    # Also exercise the tiled / multi-grid-step path with a larger batch.
    B2 = 1000  # not a multiple of the tile -> exercises the partial last block
    x_big = jax.random.normal(k2, (B2, num_fields, embed_dim), jnp.float32)
    out_big = jax.block_until_ready(factorization_machine(x_big, tb=256))
    ref_big = factorization_machine_reference(x_big)
    assert out_big.shape == (B2, embed_dim), out_big.shape
    assert jnp.allclose(out_big, ref_big, atol=1e-5, rtol=1e-5), "mismatch (tiled)"

    print("KERNEL_OK")
</pallas_src>

<mosaic_0001>
module attributes {stable_mosaic.version = 11 : i64} {
  func.func @fm_kernel(%arg0: i32, %arg1: memref<2x8x16xf32, #tpu.memory_space<vmem>>, %arg2: memref<2x16xf32, #tpu.memory_space<vmem>>) attributes {dimension_semantics = [#tpu.dimension_semantics<parallel>], iteration_bounds = array<i64: 1>, scalar_prefetch = 0 : i64, scratch_operands = 0 : i64, tpu.core_type = #tpu.core_type<tc>, window_params = [{transform_indices = @transform_0, window_bounds = array<i64: 2, 8, 16>}, {transform_indices = @transform_1, window_bounds = array<i64: 2, 16>}]} {
    %c0 = arith.constant 0 : index
    %c0_0 = arith.constant 0 : index
    %c0_1 = arith.constant 0 : index
    %0 = vector.load %arg1[%c0, %c0_0, %c0_1] : memref<2x8x16xf32, #tpu.memory_space<vmem>>, vector<2x8x16xf32>
    %cst = arith.constant dense<0.000000e+00> : vector<2x16xf32>
    %1 = vector.multi_reduction <add>, %0, %cst [1] : vector<2x8x16xf32> to vector<2x16xf32>
    %2 = arith.mulf %0, %0 : vector<2x8x16xf32>
    %cst_2 = arith.constant dense<0.000000e+00> : vector<2x16xf32>
    %3 = vector.multi_reduction <add>, %2, %cst_2 [1] : vector<2x8x16xf32> to vector<2x16xf32>
    %4 = arith.mulf %1, %1 : vector<2x16xf32>
    %5 = arith.subf %4, %3 : vector<2x16xf32>
    %cst_3 = arith.constant 5.000000e-01 : f32
    %6 = vector.broadcast %cst_3 : f32 to vector<2x16xf32>
    %7 = arith.mulf %6, %5 : vector<2x16xf32>
    %c0_4 = arith.constant 0 : index
    %c0_5 = arith.constant 0 : index
    %8 = vector.load %arg2[%c0_4, %c0_5] : memref<2x16xf32, #tpu.memory_space<vmem>>, vector<2x16xf32>
    tpu.vector_store %arg2[%c0_4, %c0_5], %7 {strides = array<i32>} : memref<2x16xf32, #tpu.memory_space<vmem>>, vector<2x16xf32>,
    return
  }
  func.func @transform_0(%arg0: i32) -> (i32, i32, i32) {
    %c0_i32 = arith.constant 0 : i32
    %c0_i32_0 = arith.constant 0 : i32
    %c0_i32_1 = arith.constant 0 : i32
    return %arg0, %c0_i32, %c0_i32_0 : i32, i32, i32
  }
  func.func @transform_1(%arg0: i32) -> (i32, i32) {
    %c0_i32 = arith.constant 0 : i32
    %c0_i32_0 = arith.constant 0 : i32
    return %arg0, %c0_i32 : i32, i32
  }
}

</mosaic_0001>

<llo_original>
// kernel: tpu_custom_call.1
$region0: #{tpu_custom_call.1}
  #allocation0 [shape = 'u32[]', space=smem, size = 0x4, offset = 0x4, fixed_abs, tag = 'smem constant byte address 0x4 - core index']
  #allocation1 [shape = 'u32[144,128]{1,0:T(1,128)}', space=vmem, size = 0x12000, scoped, tag = 'internal scratch']
  %s0 = inlined_call_operand.hbm [shape: f32[2,8,16], index: 0, kind: input, shape index: {}]
  %s1 = inlined_call_operand.hbm [shape: f32[2,16], index: 1, kind: output, shape index: {}]
  %s2 = sld [smem:[#allocation0]]
  $region18: #{tpu_custom_call.1} parent=0
    _
  %s4 = ssub.s32 1, %s2
  %s5 = scalar_select 0, %s4, %s2
  $region1: #{tpu_custom_call.1} parent=0
    #allocation2 [shape = 'u8[8192]{0}', space=vmem, size = 0x2000, scoped, tag = 'input window, operand 0, single buffered']
    #allocation3 [shape = 's32[1]{0}', space=sflag, size = 0x4, scoped, tag = 'scoped memory for tpu_custom_call.1']
    #allocation4 [shape = 's32[1]{0}', space=sflag, size = 0x4, scoped, tag = 'scoped memory for tpu_custom_call.1']
    #allocation5 [shape = 'u8[1024]{0}', space=vmem, size = 0x400, scoped, tag = 'output window, operand 0, single buffered']
    %6 = vsyncpa [#allocation3], 0
    %7 = vsyncpa [#allocation4], 0
    // Predicated region
    $region2: #{tpu_custom_call.1} parent=1 // pred_check
      _
    $region3: #{tpu_custom_call.1} parent=1 // pred_check_branch
      %9 = sbr.rel (0) target = $region5
    $region4: #{tpu_custom_call.1} parent=1 // pred_region
      %s11 = ssub.s32 256, 256
      %12 = vsyncadd [#allocation3], %s11
      %s13 = sshll.u32 [#allocation2], 4
      %s14 = int_to_ptr.vmem [resolvable:$true] %s13
      %19 = dma.hbm_to_vmem [thread:$0]  %s0, 256, %s14, [#allocation3], 128, 128, 8
    $region5: #{tpu_custom_call.1} parent=1 // pred_fallthru
      _
    // Predicated region
    $region6: #{tpu_custom_call.1} parent=1 // pred_check
      _
    $region7: #{tpu_custom_call.1} parent=1 // pred_check_branch
      %21 = sbr.rel (0) target = $region9
    $region8: #{tpu_custom_call.1} parent=1 // pred_region
      %22 = dma.done [#allocation3], 256
    $region9: #{tpu_custom_call.1} parent=1 // pred_fallthru
      _
    %v23 = vld [vmem:[#allocation2] sm:$0xff]
    %v24 = vld [vmem:[#allocation2 + $0x8] sm:$0xff]
    %vm25 = vcmask 130048
    %v26 = vsel %vm25, %v23, 0.0
    %v27 = vrot.slane %v26, 4
    %v28 = vadd.f32 %v26, %v27
    %v29 = vrot.slane %v28, 2
    %v30 = vadd.f32 %v28, %v29
    %v31 = vrot.slane %v30, 1
    %v32 = vadd.f32 %v30, %v31
    %v33 = vsel %vm25, %v24, 0.0
    %v34 = vrot.slane %v33, 4
    %v35 = vadd.f32 %v33, %v34
    %v36 = vrot.slane %v35, 2
    %v37 = vadd.f32 %v35, %v36
    %v38 = vrot.slane %v37, 1
    %v39 = vadd.f32 %v37, %v38
    %v40 = vmul.f32 %v23, %v23
    %v41 = vmul.f32 %v24, %v24
    %v42 = vsel %vm25, %v40, 0.0
    %v43 = vrot.slane %v42, 4
    %v44 = vadd.f32 %v42, %v43
    %v45 = vrot.slane %v44, 2
    %v46 = vadd.f32 %v44, %v45
    %v47 = vrot.slane %v46, 1
    %v48 = vadd.f32 %v46, %v47
    %v49 = vsel %vm25, %v41, 0.0
    %v50 = vrot.slane %v49, 4
    %v51 = vadd.f32 %v49, %v50
    %v52 = vrot.slane %v51, 2
    %v53 = vadd.f32 %v51, %v52
    %v54 = vrot.slane %v53, 1
    %v55 = vadd.f32 %v53, %v54
    %v56 = vmul.f32 %v32, %v32
    %v57 = vmul.f32 %v39, %v39
    %v58 = vsub.f32 %v56, %v48
    %v59 = vsub.f32 %v57, %v55
    %v60 = vmul.f32 %v58, 0.5
    %v61 = vmul.f32 %v59, 0.5
    %vm64 = vcmask 1041409
    %v65 = vsel %vm64, %v61, %v60
    %vm67 = vcmask 123904
    %68 = vst.msk [vmem:[#allocation5] sm:$0x3] %vm67, %v65
    // Predicated region
    $region10: #{tpu_custom_call.1} parent=1 // pred_check
      _
    $region11: #{tpu_custom_call.1} parent=1 // pred_check_branch
      %70 = sbr.rel (0) target = $region13
    $region12: #{tpu_custom_call.1} parent=1 // pred_region
      %s72 = ssub.s32 32, 32
      %73 = vsyncadd [#allocation4], %s72
      %s75 = sshll.u32 [#allocation5], 4
      %s76 = int_to_ptr.vmem [resolvable:$true] %s75
      %78 = dma.vmem_to_hbm [thread:$0]  %s76, 32, %s1, [#allocation4]
    $region13: #{tpu_custom_call.1} parent=1 // pred_fallthru
      _
    // Predicated region
    $region14: #{tpu_custom_call.1} parent=1 // pred_check
      _
    $region15: #{tpu_custom_call.1} parent=1 // pred_check_branch
      %80 = sbr.rel (0) target = $region17
    $region16: #{tpu_custom_call.1} parent=1 // pred_region
      %81 = dma.done [#allocation4], 32
    $region17: #{tpu_custom_call.1} parent=1 // pred_fallthru
      _
    %82 = vsyncpa [#allocation3], 1
    %83 = vsyncpa [#allocation4], 1

</llo_original>
